<compile_context>
chip_gen: v7x
topology: tpu7x:2x2x1
jax: 0.10.0
libtpu: 0.0.40
codegen_flags: <defaults>
</compile_context>

<pallas_src>
import functools
import math

import numpy as np
import jax
import jax.numpy as jnp
from jax.experimental import pallas as pl
from jax.experimental.pallas import tpu as pltpu

GAUSS_KERNEL = [
    [0.00078633, 0.00655965, 0.01330373, 0.00655965, 0.00078633],
    [0.00655965, 0.05472157, 0.11098164, 0.05472157, 0.00655965],
    [0.01330373, 0.11098164, 0.22508352, 0.11098164, 0.01330373],
    [0.00655965, 0.05472157, 0.11098164, 0.05472157, 0.00655965],
    [0.00078633, 0.00655965, 0.01330373, 0.00655965, 0.00078633],
]

# The published 5x5 kernel is (numerically) the outer product of a 1D 5-tap Gaussian.
# Factor it once at trace time; reconstruction error ~1e-8 per weight, far below the
# f32 rounding of the blur itself.
_G1D = tuple(GAUSS_KERNEL[2][j] / math.sqrt(GAUSS_KERNEL[2][2]) for j in range(5))


def _reflected_conv_lane(x, idx, extent, step, length):
    """5-tap reflected (pad=2) convolution along the lane axis of flattened planes.

    x      : (Cb, L) f32  -- planes flattened row-major (L = H*W lanes per plane)
    idx    : (1, L) int32 -- coordinate along the convolved image axis (row or col)
    extent : size of that image axis (H or W)
    step   : lane distance between axis neighbours (W for rows, 1 for cols)
    length : L, the roll modulus
    """
    g0, g1, g2 = _G1D[0], _G1D[1], _G1D[2]
    f32 = jnp.float32

    def shifted(d):  # shifted(d)[..., i] == x[..., i + d]  (circular; wrap gets weight 0)
        return pltpu.roll(x, (-d) % length, axis=1)

    u_m2, u_m1 = shifted(-2 * step), shifted(-step)
    u_p1, u_p2 = shifted(step), shifted(2 * step)

    lo = idx == 0
    hi = idx == extent - 1
    # ReflectionPad2d(2) folds out-of-range taps back onto in-range neighbours, so the
    # boundary rows/cols just use different weights on the same five shifted copies.
    c_m2 = jnp.where(idx <= 1, 0.0, jnp.where(hi, 2.0 * g0, g0)).astype(f32)
    c_m1 = jnp.where(lo, 0.0, jnp.where(hi, 2.0 * g1, g1)).astype(f32)
    c_0 = g2 + g0 * (idx == 1).astype(f32) + g0 * (idx == extent - 2).astype(f32)
    c_p1 = jnp.where(hi, 0.0, jnp.where(lo, 2.0 * g1, g1)).astype(f32)
    c_p2 = jnp.where(idx >= extent - 2, 0.0, jnp.where(lo, 2.0 * g0, g0)).astype(f32)

    return c_m2 * u_m2 + c_m1 * u_m1 + c_0 * x + c_p1 * u_p1 + c_p2 * u_p2


def _blur_kernel(idx_ref, x_ref, o_ref, *, H, W):
    # idx_ref : (2, L) int32 -- row index (sublane 0) / col index (sublane 1) per lane
    # x_ref   : (Cb, L)      -- Cb flattened input planes (b*c collapsed)
    # o_ref   : (Cb, L)
    L = H * W
    row = idx_ref[0:1, :]
    col = idx_ref[1:2, :]
    x = x_ref[...].astype(jnp.float32)
    v = _reflected_conv_lane(x, row, H, W, L)    # vertical 5-tap pass
    out = _reflected_conv_lane(v, col, W, 1, L)  # horizontal 5-tap pass
    o_ref[...] = out.astype(o_ref.dtype)


def _round_up(a, m):
    return (a + m - 1) // m * m


def _choose_tiling(n_planes, H, W, itemsize):
    """Planes per grid step + vmem_limit_bytes, derived from the chip's VMEM capacity."""
    lanes = _round_up(H * W, 128)
    try:
        cap = int(pltpu.get_tpu_info().vmem_capacity_bytes)  # 128 MiB v5e/v6e, 64 MiB v7x
    except Exception:
        cap = 64 << 20                                        # conservative fallback
    budget = min(cap // 2, 64 << 20)                          # 64 MiB v5e/v6e, 32 MiB v7x
    # Per plane: input + output blocks (double-buffered) plus ~8 f32-sized live
    # temporaries (shifted copies / accumulators) kept in vregs or internal scratch.
    per_plane = lanes * (2 * 2 * itemsize + 8 * 4)
    fixed = 2 * (8 * lanes * 4)         # (2,L) i32 index input, sublane-padded, 2 buffers
    cb = max(1, (budget - fixed) // per_plane)
    if n_planes <= 8:
        cb = n_planes                   # block == full first dim (allowed by (8,128) rule)
    else:
        cb = min(cb, n_planes)
        cb = min(cb, max(8, (n_planes // 8) // 8 * 8))  # keep >= ~8 steps for v7x's 2 TCs
        cb = max(8, cb // 8 * 8)        # sublane tiling: multiple of 8
    est = cb * per_plane + fixed
    vmem_limit = int(min(max(budget, est + (4 << 20)), max(cap - (4 << 20), budget)))
    return int(cb), vmem_limit


def gaussian_blur_conv(x):
    """Depthwise 5x5 Gaussian blur with ReflectionPad2d(2).  x: (B, C, H, W)."""
    B, C, H, W = x.shape
    assert H >= 3 and W >= 3, "ReflectionPad2d(2) requires H, W >= 3 (same as PyTorch)"
    N, L = B * C, H * W
    xr = x.reshape(N, L)  # free: planes are independent, flattening is contiguous

    # Per-lane (row, col) coordinates of a flattened plane; drives the boundary weights.
    idx = jnp.asarray(np.stack([np.repeat(np.arange(H, dtype=np.int32), W),
                                np.tile(np.arange(W, dtype=np.int32), H)], axis=0))

    Cb, vmem_limit = _choose_tiling(N, H, W, x.dtype.itemsize)
    # TODO(synk): very large planes (Cb == 8 still over the VMEM budget) need an H-strip
    # grid axis with a 2-row halo and in-kernel index generation; not needed at these sizes.

    out = pl.pallas_call(
        functools.partial(_blur_kernel, H=H, W=W),
        out_shape=jax.ShapeDtypeStruct((N, L), x.dtype),
        grid_spec=pltpu.PrefetchScalarGridSpec(
            num_scalar_prefetch=0,
            grid=(pl.cdiv(N, Cb),),
            in_specs=[
                pl.BlockSpec((2, L), lambda n: (0, 0)),   # constant block index: fetched once
                pl.BlockSpec((Cb, L), lambda n: (n, 0)),
            ],
            out_specs=pl.BlockSpec((Cb, L), lambda n: (n, 0)),
        ),
        compiler_params=pltpu.CompilerParams(
            dimension_semantics=("parallel",),
            vmem_limit_bytes=vmem_limit),
    )(idx, xr)
    return out.reshape(B, C, H, W)


def _reference(x):
    # Pure-JAX reference with the exact 2D weights (mirrors the PyTorch forward).
    xpad = jnp.pad(x, ((0, 0), (0, 0), (2, 2), (2, 2)), mode="reflect")
    B, C, H, W = x.shape
    k = jnp.asarray(GAUSS_KERNEL, dtype=jnp.float32)
    out = jnp.zeros_like(x)
    for dy in range(5):
        for dx in range(5):
            out = out + k[dy, dx] * xpad[:, :, dy:dy + H, dx:dx + W]
    return out


if __name__ == "__main__":
    key = jax.random.PRNGKey(0)
    B, C, H, W = 2, 4, 16, 16
    x = jax.random.normal(key, (B, C, H, W), dtype=jnp.float32)

    out = jax.block_until_ready(gaussian_blur_conv(x))
    ref = _reference(x)

    assert out.shape == (B, C, H, W)
    # 2e-5 tolerance covers the ~1e-8/weight rank-1 factorization of the rounded
    # published 5x5 kernel (well below f32 accumulation noise).
    assert jnp.allclose(out, ref, atol=2e-5, rtol=2e-5)

    print("KERNEL_OK")
</pallas_src>

<mosaic_0001>
module attributes {stable_mosaic.version = 11 : i64} {
  func.func @_blur_kernel(%arg0: i32, %arg1: memref<2x256xi32, #tpu.memory_space<vmem>>, %arg2: memref<8x256xf32, #tpu.memory_space<vmem>>, %arg3: memref<8x256xf32, #tpu.memory_space<vmem>>) attributes {dimension_semantics = [#tpu.dimension_semantics<parallel>], iteration_bounds = array<i64: 1>, scalar_prefetch = 0 : i64, scratch_operands = 0 : i64, tpu.core_type = #tpu.core_type<tc>, window_params = [{pipeline_mode = #tpu.pipeline_mode<synchronous>, transform_indices = @transform_0, window_bounds = array<i64: 2, 256>}, {transform_indices = @transform_1, window_bounds = array<i64: 8, 256>}, {transform_indices = @transform_2, window_bounds = array<i64: 8, 256>}]} {
    %c0 = arith.constant 0 : index
    %c0_0 = arith.constant 0 : index
    %0 = vector.load %arg1[%c0, %c0_0] : memref<2x256xi32, #tpu.memory_space<vmem>>, vector<1x256xi32>
    %c1 = arith.constant 1 : index
    %c0_1 = arith.constant 0 : index
    %1 = vector.load %arg1[%c1, %c0_1] : memref<2x256xi32, #tpu.memory_space<vmem>>, vector<1x256xi32>
    %c0_2 = arith.constant 0 : index
    %c0_3 = arith.constant 0 : index
    %2 = vector.load %arg2[%c0_2, %c0_3] : memref<8x256xf32, #tpu.memory_space<vmem>>, vector<8x256xf32>
    %c32_i32 = arith.constant 32 : i32
    %3 = tpu.dynamic_rotate %2 by %c32_i32 dim 1 : vector<8x256xf32>, i32 -> vector<8x256xf32>
    %c16_i32 = arith.constant 16 : i32
    %4 = tpu.dynamic_rotate %2 by %c16_i32 dim 1 : vector<8x256xf32>, i32 -> vector<8x256xf32>
    %c240_i32 = arith.constant 240 : i32
    %5 = tpu.dynamic_rotate %2 by %c240_i32 dim 1 : vector<8x256xf32>, i32 -> vector<8x256xf32>
    %c224_i32 = arith.constant 224 : i32
    %6 = tpu.dynamic_rotate %2 by %c224_i32 dim 1 : vector<8x256xf32>, i32 -> vector<8x256xf32>
    %c0_i32 = arith.constant 0 : i32
    %7 = vector.broadcast %c0_i32 : i32 to vector<1x256xi32>
    %8 = arith.cmpi eq, %0, %7 : vector<1x256xi32>
    %c15_i32 = arith.constant 15 : i32
    %9 = vector.broadcast %c15_i32 : i32 to vector<1x256xi32>
    %10 = arith.cmpi eq, %0, %9 : vector<1x256xi32>
    %c1_i32 = arith.constant 1 : i32
    %11 = vector.broadcast %c1_i32 : i32 to vector<1x256xi32>
    %12 = arith.cmpi sle, %0, %11 : vector<1x256xi32>
    %cst = arith.constant 0.0560830422 : f32
    %cst_4 = arith.constant 0.0280415211 : f32
    %13 = vector.broadcast %cst : f32 to vector<1x256xf32>
    %14 = vector.broadcast %cst_4 : f32 to vector<1x256xf32>
    %15 = arith.select %10, %13, %14 : vector<1x256xi1>, vector<1x256xf32>
    %cst_5 = arith.constant 0.000000e+00 : f32
    %16 = vector.broadcast %cst_5 : f32 to vector<1x256xf32>
    %17 = arith.select %12, %16, %15 : vector<1x256xi1>, vector<1x256xf32>
    %cst_6 = arith.constant 0.467852861 : f32
    %cst_7 = arith.constant 0.23392643 : f32
    %18 = vector.broadcast %cst_6 : f32 to vector<1x256xf32>
    %19 = vector.broadcast %cst_7 : f32 to vector<1x256xf32>
    %20 = arith.select %10, %18, %19 : vector<1x256xi1>, vector<1x256xf32>
    %cst_8 = arith.constant 0.000000e+00 : f32
    %21 = vector.broadcast %cst_8 : f32 to vector<1x256xf32>
    %22 = arith.select %8, %21, %20 : vector<1x256xi1>, vector<1x256xf32>
    %c1_i32_9 = arith.constant 1 : i32
    %23 = vector.broadcast %c1_i32_9 : i32 to vector<1x256xi32>
    %24 = arith.cmpi eq, %0, %23 : vector<1x256xi32>
    %25 = arith.extui %24 : vector<1x256xi1> to vector<1x256xi32>
    %26 = arith.sitofp %25 : vector<1x256xi32> to vector<1x256xf32>
    %cst_10 = arith.constant 0.0280415211 : f32
    %27 = vector.broadcast %cst_10 : f32 to vector<1x256xf32>
    %28 = arith.mulf %27, %26 : vector<1x256xf32>
    %cst_11 = arith.constant 0.474429667 : f32
    %29 = vector.broadcast %cst_11 : f32 to vector<1x256xf32>
    %30 = arith.addf %29, %28 : vector<1x256xf32>
    %c14_i32 = arith.constant 14 : i32
    %31 = vector.broadcast %c14_i32 : i32 to vector<1x256xi32>
    %32 = arith.cmpi eq, %0, %31 : vector<1x256xi32>
    %33 = arith.extui %32 : vector<1x256xi1> to vector<1x256xi32>
    %34 = arith.sitofp %33 : vector<1x256xi32> to vector<1x256xf32>
    %cst_12 = arith.constant 0.0280415211 : f32
    %35 = vector.broadcast %cst_12 : f32 to vector<1x256xf32>
    %36 = arith.mulf %35, %34 : vector<1x256xf32>
    %37 = arith.addf %30, %36 : vector<1x256xf32>
    %cst_13 = arith.constant 0.467852861 : f32
    %cst_14 = arith.constant 0.23392643 : f32
    %38 = vector.broadcast %cst_13 : f32 to vector<1x256xf32>
    %39 = vector.broadcast %cst_14 : f32 to vector<1x256xf32>
    %40 = arith.select %8, %38, %39 : vector<1x256xi1>, vector<1x256xf32>
    %cst_15 = arith.constant 0.000000e+00 : f32
    %41 = vector.broadcast %cst_15 : f32 to vector<1x256xf32>
    %42 = arith.select %10, %41, %40 : vector<1x256xi1>, vector<1x256xf32>
    %c14_i32_16 = arith.constant 14 : i32
    %43 = vector.broadcast %c14_i32_16 : i32 to vector<1x256xi32>
    %44 = arith.cmpi sge, %0, %43 : vector<1x256xi32>
    %cst_17 = arith.constant 0.0560830422 : f32
    %cst_18 = arith.constant 0.0280415211 : f32
    %45 = vector.broadcast %cst_17 : f32 to vector<1x256xf32>
    %46 = vector.broadcast %cst_18 : f32 to vector<1x256xf32>
    %47 = arith.select %8, %45, %46 : vector<1x256xi1>, vector<1x256xf32>
    %cst_19 = arith.constant 0.000000e+00 : f32
    %48 = vector.broadcast %cst_19 : f32 to vector<1x256xf32>
    %49 = arith.select %44, %48, %47 : vector<1x256xi1>, vector<1x256xf32>
    %50 = vector.broadcast %17 : vector<1x256xf32> to vector<8x256xf32>
    %51 = arith.mulf %50, %3 : vector<8x256xf32>
    %52 = vector.broadcast %22 : vector<1x256xf32> to vector<8x256xf32>
    %53 = arith.mulf %52, %4 : vector<8x256xf32>
    %54 = arith.addf %51, %53 : vector<8x256xf32>
    %55 = vector.broadcast %37 : vector<1x256xf32> to vector<8x256xf32>
    %56 = arith.mulf %55, %2 : vector<8x256xf32>
    %57 = arith.addf %54, %56 : vector<8x256xf32>
    %58 = vector.broadcast %42 : vector<1x256xf32> to vector<8x256xf32>
    %59 = arith.mulf %58, %5 : vector<8x256xf32>
    %60 = arith.addf %57, %59 : vector<8x256xf32>
    %61 = vector.broadcast %49 : vector<1x256xf32> to vector<8x256xf32>
    %62 = arith.mulf %61, %6 : vector<8x256xf32>
    %63 = arith.addf %60, %62 : vector<8x256xf32>
    %c2_i32 = arith.constant 2 : i32
    %64 = tpu.dynamic_rotate %63 by %c2_i32 dim 1 : vector<8x256xf32>, i32 -> vector<8x256xf32>
    %c1_i32_20 = arith.constant 1 : i32
    %65 = tpu.dynamic_rotate %63 by %c1_i32_20 dim 1 : vector<8x256xf32>, i32 -> vector<8x256xf32>
    %c255_i32 = arith.constant 255 : i32
    %66 = tpu.dynamic_rotate %63 by %c255_i32 dim 1 : vector<8x256xf32>, i32 -> vector<8x256xf32>
    %c254_i32 = arith.constant 254 : i32
    %67 = tpu.dynamic_rotate %63 by %c254_i32 dim 1 : vector<8x256xf32>, i32 -> vector<8x256xf32>
    %c0_i32_21 = arith.constant 0 : i32
    %68 = vector.broadcast %c0_i32_21 : i32 to vector<1x256xi32>
    %69 = arith.cmpi eq, %1, %68 : vector<1x256xi32>
    %c15_i32_22 = arith.constant 15 : i32
    %70 = vector.broadcast %c15_i32_22 : i32 to vector<1x256xi32>
    %71 = arith.cmpi eq, %1, %70 : vector<1x256xi32>
    %c1_i32_23 = arith.constant 1 : i32
    %72 = vector.broadcast %c1_i32_23 : i32 to vector<1x256xi32>
    %73 = arith.cmpi sle, %1, %72 : vector<1x256xi32>
    %cst_24 = arith.constant 0.0560830422 : f32
    %cst_25 = arith.constant 0.0280415211 : f32
    %74 = vector.broadcast %cst_24 : f32 to vector<1x256xf32>
    %75 = vector.broadcast %cst_25 : f32 to vector<1x256xf32>
    %76 = arith.select %71, %74, %75 : vector<1x256xi1>, vector<1x256xf32>
    %cst_26 = arith.constant 0.000000e+00 : f32
    %77 = vector.broadcast %cst_26 : f32 to vector<1x256xf32>
    %78 = arith.select %73, %77, %76 : vector<1x256xi1>, vector<1x256xf32>
    %cst_27 = arith.constant 0.467852861 : f32
    %cst_28 = arith.constant 0.23392643 : f32
    %79 = vector.broadcast %cst_27 : f32 to vector<1x256xf32>
    %80 = vector.broadcast %cst_28 : f32 to vector<1x256xf32>
    %81 = arith.select %71, %79, %80 : vector<1x256xi1>, vector<1x256xf32>
    %cst_29 = arith.constant 0.000000e+00 : f32
    %82 = vector.broadcast %cst_29 : f32 to vector<1x256xf32>
    %83 = arith.select %69, %82, %81 : vector<1x256xi1>, vector<1x256xf32>
    %c1_i32_30 = arith.constant 1 : i32
    %84 = vector.broadcast %c1_i32_30 : i32 to vector<1x256xi32>
    %85 = arith.cmpi eq, %1, %84 : vector<1x256xi32>
    %86 = arith.extui %85 : vector<1x256xi1> to vector<1x256xi32>
    %87 = arith.sitofp %86 : vector<1x256xi32> to vector<1x256xf32>
    %cst_31 = arith.constant 0.0280415211 : f32
    %88 = vector.broadcast %cst_31 : f32 to vector<1x256xf32>
    %89 = arith.mulf %88, %87 : vector<1x256xf32>
    %cst_32 = arith.constant 0.474429667 : f32
    %90 = vector.broadcast %cst_32 : f32 to vector<1x256xf32>
    %91 = arith.addf %90, %89 : vector<1x256xf32>
    %c14_i32_33 = arith.constant 14 : i32
    %92 = vector.broadcast %c14_i32_33 : i32 to vector<1x256xi32>
    %93 = arith.cmpi eq, %1, %92 : vector<1x256xi32>
    %94 = arith.extui %93 : vector<1x256xi1> to vector<1x256xi32>
    %95 = arith.sitofp %94 : vector<1x256xi32> to vector<1x256xf32>
    %cst_34 = arith.constant 0.0280415211 : f32
    %96 = vector.broadcast %cst_34 : f32 to vector<1x256xf32>
    %97 = arith.mulf %96, %95 : vector<1x256xf32>
    %98 = arith.addf %91, %97 : vector<1x256xf32>
    %cst_35 = arith.constant 0.467852861 : f32
    %cst_36 = arith.constant 0.23392643 : f32
    %99 = vector.broadcast %cst_35 : f32 to vector<1x256xf32>
    %100 = vector.broadcast %cst_36 : f32 to vector<1x256xf32>
    %101 = arith.select %69, %99, %100 : vector<1x256xi1>, vector<1x256xf32>
    %cst_37 = arith.constant 0.000000e+00 : f32
    %102 = vector.broadcast %cst_37 : f32 to vector<1x256xf32>
    %103 = arith.select %71, %102, %101 : vector<1x256xi1>, vector<1x256xf32>
    %c14_i32_38 = arith.constant 14 : i32
    %104 = vector.broadcast %c14_i32_38 : i32 to vector<1x256xi32>
    %105 = arith.cmpi sge, %1, %104 : vector<1x256xi32>
    %cst_39 = arith.constant 0.0560830422 : f32
    %cst_40 = arith.constant 0.0280415211 : f32
    %106 = vector.broadcast %cst_39 : f32 to vector<1x256xf32>
    %107 = vector.broadcast %cst_40 : f32 to vector<1x256xf32>
    %108 = arith.select %69, %106, %107 : vector<1x256xi1>, vector<1x256xf32>
    %cst_41 = arith.constant 0.000000e+00 : f32
    %109 = vector.broadcast %cst_41 : f32 to vector<1x256xf32>
    %110 = arith.select %105, %109, %108 : vector<1x256xi1>, vector<1x256xf32>
    %111 = vector.broadcast %78 : vector<1x256xf32> to vector<8x256xf32>
    %112 = arith.mulf %111, %64 : vector<8x256xf32>
    %113 = vector.broadcast %83 : vector<1x256xf32> to vector<8x256xf32>
    %114 = arith.mulf %113, %65 : vector<8x256xf32>
    %115 = arith.addf %112, %114 : vector<8x256xf32>
    %116 = vector.broadcast %98 : vector<1x256xf32> to vector<8x256xf32>
    %117 = arith.mulf %116, %63 : vector<8x256xf32>
    %118 = arith.addf %115, %117 : vector<8x256xf32>
    %119 = vector.broadcast %103 : vector<1x256xf32> to vector<8x256xf32>
    %120 = arith.mulf %119, %66 : vector<8x256xf32>
    %121 = arith.addf %118, %120 : vector<8x256xf32>
    %122 = vector.broadcast %110 : vector<1x256xf32> to vector<8x256xf32>
    %123 = arith.mulf %122, %67 : vector<8x256xf32>
    %124 = arith.addf %121, %123 : vector<8x256xf32>
    %c0_42 = arith.constant 0 : index
    %c0_43 = arith.constant 0 : index
    %125 = vector.load %arg3[%c0_42, %c0_43] : memref<8x256xf32, #tpu.memory_space<vmem>>, vector<8x256xf32>
    tpu.vector_store %arg3[%c0_42, %c0_43], %124 {strides = array<i32>} : memref<8x256xf32, #tpu.memory_space<vmem>>, vector<8x256xf32>,
    return
  }
  func.func @transform_0(%arg0: i32) -> (i32, i32) {
    %c0_i32 = arith.constant 0 : i32
    %c0_i32_0 = arith.constant 0 : i32
    %c0_i32_1 = arith.constant 0 : i32
    return %c0_i32, %c0_i32_0 : i32, i32
  }
  func.func @transform_1(%arg0: i32) -> (i32, i32) {
    %c0_i32 = arith.constant 0 : i32
    %c0_i32_0 = arith.constant 0 : i32
    return %arg0, %c0_i32 : i32, i32
  }
  func.func @transform_2(%arg0: i32) -> (i32, i32) {
    %c0_i32 = arith.constant 0 : i32
    %c0_i32_0 = arith.constant 0 : i32
    return %arg0, %c0_i32 : i32, i32
  }
}

</mosaic_0001>

<llo_original>
// kernel: tpu_custom_call.1
$region0: #{tpu_custom_call.1}
  #allocation0 [shape = 'u32[]', space=smem, size = 0x4, offset = 0x4, fixed_abs, tag = 'smem constant byte address 0x4 - core index']
  #allocation1 [shape = 'u32[144,128]{1,0:T(1,128)}', space=vmem, size = 0x12000, scoped, tag = 'internal scratch']
  %s0 = inlined_call_operand.hbm [shape: s32[2,256], index: 0, kind: input, shape index: {}]
  %s1 = inlined_call_operand.hbm [shape: f32[8,256], index: 1, kind: input, shape index: {}]
  %s2 = inlined_call_operand.hbm [shape: f32[8,256], index: 2, kind: output, shape index: {}]
  %s3 = sld [smem:[#allocation0]]
  $region26: #{tpu_custom_call.1} parent=0
    _
  %s5 = ssub.s32 1, %s3
  %s6 = scalar_select 0, %s5, %s3
  $region1: #{tpu_custom_call.1} parent=0
    #allocation2 [shape = 'u8[2048]{0}', space=vmem, size = 0x800, scoped, tag = 'input window, operand 0, single buffered']
    #allocation3 [shape = 's32[1]{0}', space=sflag, size = 0x4, scoped, tag = 'scoped memory for tpu_custom_call.1']
    #allocation4 [shape = 's32[1]{0}', space=sflag, size = 0x4, scoped, tag = 'scoped memory for tpu_custom_call.1']
    #allocation5 [shape = 'u8[8192]{0}', space=vmem, size = 0x2000, scoped, tag = 'input window, operand 1, single buffered']
    #allocation6 [shape = 's32[1]{0}', space=sflag, size = 0x4, scoped, tag = 'scoped memory for tpu_custom_call.1']
    #allocation7 [shape = 'u8[8192]{0}', space=vmem, size = 0x2000, scoped, tag = 'output window, operand 0, single buffered']
    %7 = vsyncpa [#allocation3], 0
    %8 = vsyncpa [#allocation6], 0
    %9 = vsyncpa [#allocation4], 0
    // Predicated region
    $region2: #{tpu_custom_call.1} parent=1 // pred_check
      _
    $region3: #{tpu_custom_call.1} parent=1 // pred_check_branch
      %11 = sbr.rel (0) target = $region5
    $region4: #{tpu_custom_call.1} parent=1 // pred_region
      %s13 = ssub.s32 64, 64
      %14 = vsyncadd [#allocation3], %s13
      %s16 = sshll.u32 [#allocation2], 4
      %s17 = int_to_ptr.vmem [resolvable:$true] %s16
      %19 = dma.hbm_to_vmem [thread:$0]  %s0, 64, %s17, [#allocation3]
    $region5: #{tpu_custom_call.1} parent=1 // pred_fallthru
      _
    // Predicated region
    $region6: #{tpu_custom_call.1} parent=1 // pred_check
      _
    $region7: #{tpu_custom_call.1} parent=1 // pred_check_branch
      %21 = sbr.rel (0) target = $region9
    $region8: #{tpu_custom_call.1} parent=1 // pred_region
      %s23 = ssub.s32 256, 256
      %24 = vsyncadd [#allocation6], %s23
      %s26 = sshll.u32 [#allocation5], 4
      %s27 = int_to_ptr.vmem [resolvable:$true] %s26
      %29 = dma.hbm_to_vmem [thread:$0]  %s1, 256, %s27, [#allocation6]
    $region9: #{tpu_custom_call.1} parent=1 // pred_fallthru
      _
    // Predicated region
    $region10: #{tpu_custom_call.1} parent=1 // pred_check
      _
    $region11: #{tpu_custom_call.1} parent=1 // pred_check_branch
      %31 = sbr.rel (0) target = $region13
    $region12: #{tpu_custom_call.1} parent=1 // pred_region
      %32 = dma.done [#allocation3], 64
    $region13: #{tpu_custom_call.1} parent=1 // pred_fallthru
      _
    // Predicated region
    $region14: #{tpu_custom_call.1} parent=1 // pred_check
      _
    $region15: #{tpu_custom_call.1} parent=1 // pred_check_branch
      %34 = sbr.rel (0) target = $region17
    $region16: #{tpu_custom_call.1} parent=1 // pred_region
      %35 = dma.done [#allocation6], 256
    $region17: #{tpu_custom_call.1} parent=1 // pred_fallthru
      _
    %v36 = vld [vmem:[#allocation2] ss:$2 sm:$0x3]
    %s37 = scalar_lea.vmem [#allocation2], 1
    %v38 = vld [vmem:[%s37] ss:$2 sm:$0x3]
    %v39 = vld [vmem:[#allocation5] sm:$0xff]
    %v40 = vld [vmem:[#allocation5 + $0x8] sm:$0xff]
    %41 = vrot.lane.b32.xlu0 %v39, 32
    %v42 = vpop.permute.xlu0 %41
    %43 = vrot.lane.b32.xlu0 %v40, 32
    %v44 = vpop.permute.xlu0 %43
    %v45 = vlaneseq
    %v46 = vand.u32 %v45, 127
    %vm47 = vcmp.lt.s32.totalorder %v46, 32
    %v48 = vsel %vm47, %v42, %v44
    %v49 = vsel %vm47, %v44, %v42
    %50 = vrot.lane.b32.xlu0 %v39, 16
    %v51 = vpop.permute.xlu0 %50
    %52 = vrot.lane.b32.xlu0 %v40, 16
    %v53 = vpop.permute.xlu0 %52
    %vm54 = vcmp.lt.s32.totalorder %v46, 16
    %v55 = vsel %vm54, %v51, %v53
    %v56 = vsel %vm54, %v53, %v51
    %57 = vrot.lane.b32.xlu0 %v39, 112
    %v58 = vpop.permute.xlu0 %57
    %59 = vrot.lane.b32.xlu0 %v40, 112
    %v60 = vpop.permute.xlu0 %59
    %vm61 = vcmp.lt.s32.totalorder %v46, 112
    %v62 = vsel %vm61, %v58, %v60
    %v63 = vsel %vm61, %v60, %v58
    %64 = vrot.lane.b32.xlu0 %v39, 96
    %v65 = vpop.permute.xlu0 %64
    %66 = vrot.lane.b32.xlu0 %v40, 96
    %v67 = vpop.permute.xlu0 %66
    %vm68 = vcmp.lt.s32.totalorder %v46, 96
    %v69 = vsel %vm68, %v65, %v67
    %v70 = vsel %vm68, %v67, %v65
    %vm71 = vcmp.eq.s32.totalorder %v36, 0
    %vm72 = vcmp.eq.s32.totalorder %v36, 15
    %vm73 = vcmp.le.s32.totalorder %v36, 1
    %v74 = vsel %vm72, 0.056083042, 0.028041521
    %v75 = vsel %vm73, 0.0, %v74
    %v76 = vsel %vm72, 0.46785286, 0.23392643
    %v77 = vsel %vm71, 0.0, %v76
    %vm78 = vcmp.eq.s32.totalorder %v36, 1
    %v79 = vsel %vm78, 1, 0
    %v80 = vcvt.s32.f32 %v79
    %v81 = vmul.f32 %v80, 0.028041521
    %v82 = vadd.f32 %v81, 0.47442967
    %vm83 = vcmp.eq.s32.totalorder %v36, 14
    %v84 = vsel %vm83, 1, 0
    %v85 = vcvt.s32.f32 %v84
    %v86 = vmul.f32 %v85, 0.028041521
    %v87 = vadd.f32 %v82, %v86
    %v88 = vsel %vm71, 0.46785286, 0.23392643
    %v89 = vsel %vm72, 0.0, %v88
    %vm90 = vcmp.ge.s32.totalorder %v36, 14
    %v91 = vsel %vm71, 0.056083042, 0.028041521
    %v92 = vsel %vm90, 0.0, %v91
    %v94 = vlaneseq
    %v95 = vshrl.u32 %v94, 7
    %v96 = vsub.s32 0, %v95
    %v97 = vrot.slane %v75, %v96
    %v98 = vlaneseq
    %v99 = vshrl.u32 %v98, 7
    %v100 = vsub.s32 1, %v99
    %v101 = vrot.slane %v75, %v100
    %v104 = vmul.f32 %v97, %v49
    %v105 = vmul.f32 %v101, %v48
    %v107 = vlaneseq
    %v108 = vshrl.u32 %v107, 7
    %v109 = vsub.s32 0, %v108
    %v110 = vrot.slane %v77, %v109
    %v111 = vlaneseq
    %v112 = vshrl.u32 %v111, 7
    %v113 = vsub.s32 1, %v112
    %v114 = vrot.slane %v77, %v113
    %v117 = vmul.f32 %v110, %v56
    %v118 = vmul.f32 %v114, %v55
    %v119 = vadd.f32 %v104, %v117
    %v120 = vadd.f32 %v105, %v118
    %v122 = vlaneseq
    %v123 = vshrl.u32 %v122, 7
    %v124 = vsub.s32 0, %v123
    %v125 = vrot.slane %v87, %v124
    %v126 = vlaneseq
    %v127 = vshrl.u32 %v126, 7
    %v128 = vsub.s32 1, %v127
    %v129 = vrot.slane %v87, %v128
    %v132 = vmul.f32 %v125, %v39
    %v133 = vmul.f32 %v129, %v40
    %v134 = vadd.f32 %v119, %v132
    %v135 = vadd.f32 %v120, %v133
    %v137 = vlaneseq
    %v138 = vshrl.u32 %v137, 7
    %v139 = vsub.s32 0, %v138
    %v140 = vrot.slane %v89, %v139
    %v141 = vlaneseq
    %v142 = vshrl.u32 %v141, 7
    %v143 = vsub.s32 1, %v142
    %v144 = vrot.slane %v89, %v143
    %v147 = vmul.f32 %v140, %v62
    %v148 = vmul.f32 %v144, %v63
    %v149 = vadd.f32 %v134, %v147
    %v150 = vadd.f32 %v135, %v148
    %v152 = vlaneseq
    %v153 = vshrl.u32 %v152, 7
    %v154 = vsub.s32 0, %v153
    %v155 = vrot.slane %v92, %v154
    %v156 = vlaneseq
    %v157 = vshrl.u32 %v156, 7
    %v158 = vsub.s32 1, %v157
    %v159 = vrot.slane %v92, %v158
    %v162 = vmul.f32 %v155, %v69
    %v163 = vmul.f32 %v159, %v70
    %v164 = vadd.f32 %v149, %v162
    %v165 = vadd.f32 %v150, %v163
    %166 = vrot.lane.b32.xlu0 %v164, 2
    %v167 = vpop.permute.xlu0 %166
    %168 = vrot.lane.b32.xlu0 %v165, 2
    %v169 = vpop.permute.xlu0 %168
    %vm170 = vcmp.lt.s32.totalorder %v46, 2
    %v171 = vsel %vm170, %v167, %v169
    %v172 = vsel %vm170, %v169, %v167
    %173 = vrot.lane.b32.xlu0 %v164, 1
    %v174 = vpop.permute.xlu0 %173
    %175 = vrot.lane.b32.xlu0 %v165, 1
    %v176 = vpop.permute.xlu0 %175
    %vm177 = vcmp.lt.s32.totalorder %v46, 1
    %v178 = vsel %vm177, %v174, %v176
    %v179 = vsel %vm177, %v176, %v174
    %180 = vrot.lane.b32.xlu0 %v164, 127
    %v181 = vpop.permute.xlu0 %180
    %182 = vrot.lane.b32.xlu0 %v165, 127
    %v183 = vpop.permute.xlu0 %182
    %vm184 = vcmp.lt.s32.totalorder %v46, 127
    %v185 = vsel %vm184, %v181, %v183
    %v186 = vsel %vm184, %v183, %v181
    %187 = vrot.lane.b32.xlu0 %v164, 126
    %v188 = vpop.permute.xlu0 %187
    %189 = vrot.lane.b32.xlu0 %v165, 126
    %v190 = vpop.permute.xlu0 %189
    %vm191 = vcmp.lt.s32.totalorder %v46, 126
    %v192 = vsel %vm191, %v188, %v190
    %v193 = vsel %vm191, %v190, %v188
    %vm194 = vcmp.eq.s32.totalorder %v38, 0
    %vm195 = vcmp.eq.s32.totalorder %v38, 15
    %vm196 = vcmp.le.s32.totalorder %v38, 1
    %v197 = vsel %vm195, 0.056083042, 0.028041521
    %v198 = vsel %vm196, 0.0, %v197
    %v199 = vsel %vm195, 0.46785286, 0.23392643
    %v200 = vsel %vm194, 0.0, %v199
    %vm201 = vcmp.eq.s32.totalorder %v38, 1
    %v202 = vsel %vm201, 1, 0
    %v203 = vcvt.s32.f32 %v202
    %v204 = vmul.f32 %v203, 0.028041521
    %v205 = vadd.f32 %v204, 0.47442967
    %vm206 = vcmp.eq.s32.totalorder %v38, 14
    %v207 = vsel %vm206, 1, 0
    %v208 = vcvt.s32.f32 %v207
    %v209 = vmul.f32 %v208, 0.028041521
    %v210 = vadd.f32 %v205, %v209
    %v211 = vsel %vm194, 0.46785286, 0.23392643
    %v212 = vsel %vm195, 0.0, %v211
    %vm213 = vcmp.ge.s32.totalorder %v38, 14
    %v214 = vsel %vm194, 0.056083042, 0.028041521
    %v215 = vsel %vm213, 0.0, %v214
    %v217 = vlaneseq
    %v218 = vshrl.u32 %v217, 7
    %v219 = vsub.s32 0, %v218
    %v220 = vrot.slane %v198, %v219
    %v221 = vlaneseq
    %v222 = vshrl.u32 %v221, 7
    %v223 = vsub.s32 1, %v222
    %v224 = vrot.slane %v198, %v223
    %v227 = vmul.f32 %v220, %v172
    %v228 = vmul.f32 %v224, %v171
    %v230 = vlaneseq
    %v231 = vshrl.u32 %v230, 7
    %v232 = vsub.s32 0, %v231
    %v233 = vrot.slane %v200, %v232
    %v234 = vlaneseq
    %v235 = vshrl.u32 %v234, 7
    %v236 = vsub.s32 1, %v235
    %v237 = vrot.slane %v200, %v236
    %v240 = vmul.f32 %v233, %v179
    %v241 = vmul.f32 %v237, %v178
    %v242 = vadd.f32 %v227, %v240
    %v243 = vadd.f32 %v228, %v241
    %v245 = vlaneseq
    %v246 = vshrl.u32 %v245, 7
    %v247 = vsub.s32 0, %v246
    %v248 = vrot.slane %v210, %v247
    %v249 = vlaneseq
    %v250 = vshrl.u32 %v249, 7
    %v251 = vsub.s32 1, %v250
    %v252 = vrot.slane %v210, %v251
    %v255 = vmul.f32 %v248, %v164
    %v256 = vmul.f32 %v252, %v165
    %v257 = vadd.f32 %v242, %v255
    %v258 = vadd.f32 %v243, %v256
    %v260 = vlaneseq
    %v261 = vshrl.u32 %v260, 7
    %v262 = vsub.s32 0, %v261
    %v263 = vrot.slane %v212, %v262
    %v264 = vlaneseq
    %v265 = vshrl.u32 %v264, 7
    %v266 = vsub.s32 1, %v265
    %v267 = vrot.slane %v212, %v266
    %v270 = vmul.f32 %v263, %v185
    %v271 = vmul.f32 %v267, %v186
    %v272 = vadd.f32 %v257, %v270
    %v273 = vadd.f32 %v258, %v271
    %v275 = vlaneseq
    %v276 = vshrl.u32 %v275, 7
    %v277 = vsub.s32 0, %v276
    %v278 = vrot.slane %v215, %v277
    %v279 = vlaneseq
    %v280 = vshrl.u32 %v279, 7
    %v281 = vsub.s32 1, %v280
    %v282 = vrot.slane %v215, %v281
    %v285 = vmul.f32 %v278, %v192
    %v286 = vmul.f32 %v282, %v193
    %v287 = vadd.f32 %v272, %v285
    %v288 = vadd.f32 %v273, %v286
    %289 = vst [vmem:[#allocation7] sm:$0xff] %v287
    %290 = vst [vmem:[#allocation7 + $0x8] sm:$0xff] %v288
    // Predicated region
    $region18: #{tpu_custom_call.1} parent=1 // pred_check
      _
    $region19: #{tpu_custom_call.1} parent=1 // pred_check_branch
      %292 = sbr.rel (0) target = $region21
    $region20: #{tpu_custom_call.1} parent=1 // pred_region
      %s294 = ssub.s32 256, 256
      %295 = vsyncadd [#allocation4], %s294
      %s297 = sshll.u32 [#allocation7], 4
      %s298 = int_to_ptr.vmem [resolvable:$true] %s297
      %300 = dma.vmem_to_hbm [thread:$0]  %s298, 256, %s2, [#allocation4]
    $region21: #{tpu_custom_call.1} parent=1 // pred_fallthru
      _
    // Predicated region
    $region22: #{tpu_custom_call.1} parent=1 // pred_check
      _
    $region23: #{tpu_custom_call.1} parent=1 // pred_check_branch
      %302 = sbr.rel (0) target = $region25
    $region24: #{tpu_custom_call.1} parent=1 // pred_region
      %303 = dma.done [#allocation4], 256
    $region25: #{tpu_custom_call.1} parent=1 // pred_fallthru
      _
    %304 = vsyncpa [#allocation3], 1
    %305 = vsyncpa [#allocation6], 1
    %306 = vsyncpa [#allocation4], 1

</llo_original>
